<compile_context>
chip_gen: v6e
topology: v6e:2x2x1
jax: 0.10.0
libtpu: 0.0.40
codegen_flags: <defaults>
</compile_context>

<pallas_src>
import jax
import jax.numpy as jnp
from jax.experimental import pallas as pl
from jax.experimental.pallas import tpu as pltpu


def _round_up(x, m):
    return (x + m - 1) // m * m


def _sublane_pack(dtype):
    # Rows per sublane tile: 8 for 4-byte, 16 for 2-byte, 32 for 1-byte dtypes.
    return {4: 8, 2: 16, 1: 32}.get(jnp.dtype(dtype).itemsize, 8)


def _vmem_budget_bytes():
    """~75% of physical VMEM: 48 MiB on v7x, 96 MiB on v5e/v6e."""
    try:
        cap = int(pltpu.get_tpu_info().vmem_capacity_bytes)
    except Exception:
        cap = 128 << 20
    return (cap * 3) // 4


def _footprint_bytes(tm, tff, d_model, c_size, o_size, use_acc):
    x_t = 2 * tm * d_model * c_size           # double-buffered x tile
    w1_t = 2 * d_model * tff * c_size         # double-buffered W1 slice
    w2_t = 2 * tff * d_model * c_size         # double-buffered W2 slice
    o_t = 2 * tm * d_model * o_size           # output tile
    acc = tm * d_model * 4 if use_acc else 0  # f32 accumulator scratch
    h_t = tm * tff * 4                        # f32 intermediate
    return x_t + w1_t + w2_t + o_t + acc + h_t + (2 << 20)  # headroom


def _choose_ff_tile(dim_ff, tile_ff):
    """Largest multiple of 128 <= tile_ff that divides dim_ff (else full extent).

    Guarantees dim_ff % tff == 0, so the weights never need padding.
    """
    if dim_ff <= tile_ff:
        return dim_ff
    if dim_ff % 128 != 0:
        return dim_ff                        # single full-extent tile
    t = (min(tile_ff, dim_ff) // 128) * 128
    while t >= 128:
        if dim_ff % t == 0:
            return t
        t -= 128
    return dim_ff


def _choose_m_tile(M, tile_m, pack):
    tile_m = max(pack, (tile_m // pack) * pack)
    if M > tile_m:
        return tile_m, _round_up(M, tile_m)
    if M >= 2 * pack:
        # Short input: still cut >= 2 M tiles so both v7x TensorCores get work.
        tm = _round_up(-(-M // 2), pack)
        return tm, 2 * tm
    tm = _round_up(max(M, 1), pack)
    return tm, tm


def _ff_kernel_f32out(x_ref, w1_ref, b1_ref, w2_ref, b2_ref, o_ref):
    """f32 output: accumulate second-layer contributions directly into o_ref."""
    j = pl.program_id(1)

    h = jnp.dot(x_ref[...], w1_ref[...], preferred_element_type=jnp.float32)
    h = jnp.maximum(h + b1_ref[...], 0.0)
    contrib = jnp.dot(h.astype(w2_ref.dtype), w2_ref[...],
                      preferred_element_type=jnp.float32)

    @pl.when(j == 0)
    def _init():
        o_ref[...] = contrib

    @pl.when(j > 0)
    def _accum():
        o_ref[...] += contrib

    @pl.when(j == pl.num_programs(1) - 1)
    def _finalize():
        o_ref[...] += b2_ref[...]


def _ff_kernel_acc(x_ref, w1_ref, b1_ref, w2_ref, b2_ref, o_ref, acc_ref):
    """Narrow output dtype: keep an f32 scratch accumulator, cast once at end."""
    j = pl.program_id(1)

    @pl.when(j == 0)
    def _init():
        acc_ref[...] = jnp.zeros_like(acc_ref)

    h = jnp.dot(x_ref[...], w1_ref[...], preferred_element_type=jnp.float32)
    h = jnp.maximum(h + b1_ref[...], 0.0)
    acc_ref[...] += jnp.dot(h.astype(w2_ref.dtype), w2_ref[...],
                            preferred_element_type=jnp.float32)

    @pl.when(j == pl.num_programs(1) - 1)
    def _finalize():
        o_ref[...] = (acc_ref[...] + b2_ref[...]).astype(o_ref.dtype)


def feed_forward(x, w1, b1, w2, b2, *, tile_m=512, tile_ff=512,
                 compute_dtype=jnp.bfloat16):
    """y = relu(x @ w1 + b1) @ w2 + b2.

    x: (batch, seq, d_model); w1: (d_model, dim_ff); w2: (dim_ff, d_model)
    (weights stored (in, out), i.e. torch.nn.Linear weight transposed).

    compute_dtype=jnp.bfloat16 (default) runs both matmuls at MXU-native rate
    with f32 accumulation; pass compute_dtype=None for exact f32 matmuls.
    Pass weights already stored in compute_dtype to avoid the per-call cast.
    """
    batch, seq, d_model = x.shape
    dim_ff = w1.shape[1]
    assert w1.shape == (d_model, dim_ff)
    assert w2.shape == (dim_ff, d_model)
    out_dtype = x.dtype
    M = batch * seq

    cdt = jnp.dtype(compute_dtype) if compute_dtype is not None else jnp.dtype(x.dtype)
    x2 = x.reshape(M, d_model).astype(cdt)
    w1c = w1.astype(cdt)
    w2c = w2.astype(cdt)
    b1_2d = b1.reshape(1, dim_ff).astype(jnp.float32)
    b2_2d = b2.reshape(1, d_model).astype(jnp.float32)

    pack = _sublane_pack(cdt)
    use_acc = jnp.dtype(out_dtype) != jnp.dtype(jnp.float32)
    budget = _vmem_budget_bytes()
    c_size = cdt.itemsize
    o_size = jnp.dtype(out_dtype).itemsize

    # ---- tile selection under the generation's VMEM budget ----
    tff = _choose_ff_tile(dim_ff, tile_ff)
    eff_tile_m = max(pack, (tile_m // pack) * pack)
    while (eff_tile_m > max(pack, 128)
           and _footprint_bytes(eff_tile_m, tff, d_model, c_size, o_size,
                                use_acc) > budget):
        eff_tile_m //= 2
    eff_tile_m = max(pack, (eff_tile_m // pack) * pack)

    tm, M_pad = _choose_m_tile(M, eff_tile_m, pack)
    if M_pad != M:
        x2 = jnp.pad(x2, ((0, M_pad - M), (0, 0)))

    grid_m = M_pad // tm
    grid_ff = dim_ff // tff
    grid = (grid_m, grid_ff)

    cost = pl.CostEstimate(
        flops=int(4 * M_pad * d_model * dim_ff),
        transcendentals=0,
        bytes_accessed=int(M_pad * d_model * c_size                 # x in
                           + M_pad * d_model * o_size               # out
                           + grid_m * 2 * d_model * dim_ff * c_size  # W1+W2 per M tile
                           + 4 * (dim_ff + d_model)))               # biases

    in_specs = [
        pl.BlockSpec((tm, d_model), lambda i, j: (i, 0)),    # x rows
        pl.BlockSpec((d_model, tff), lambda i, j: (0, j)),   # W1 column slice
        pl.BlockSpec((1, tff), lambda i, j: (0, j)),         # b1 slice
        pl.BlockSpec((tff, d_model), lambda i, j: (j, 0)),   # W2 row slice
        pl.BlockSpec((1, d_model), lambda i, j: (0, 0)),     # b2
    ]
    out_spec = pl.BlockSpec((tm, d_model), lambda i, j: (i, 0))

    if use_acc:
        kernel = _ff_kernel_acc
        scratch = [pltpu.VMEM((tm, d_model), jnp.float32)]
    else:
        kernel = _ff_kernel_f32out
        scratch = []

    out2 = pl.pallas_call(
        kernel,
        out_shape=jax.ShapeDtypeStruct((M_pad, d_model), out_dtype),
        grid_spec=pltpu.PrefetchScalarGridSpec(
            num_scalar_prefetch=0,
            grid=grid,
            in_specs=in_specs,
            out_specs=out_spec,
            scratch_shapes=scratch,
        ),
        compiler_params=pltpu.CompilerParams(
            dimension_semantics=("parallel", "arbitrary"),
            vmem_limit_bytes=budget),
        cost_estimate=cost,
    )(x2, w1c, b1_2d, w2c, b2_2d)

    return out2[:M].reshape(batch, seq, d_model)


def _init_params(key, d_model, dim_ff, dtype=jnp.float32):
    """Deterministic PyTorch-Linear-style init (uniform +-1/sqrt(fan_in))."""
    k1, k2, k3, k4 = jax.random.split(key, 4)
    bound1 = 1.0 / (d_model ** 0.5)
    bound2 = 1.0 / (dim_ff ** 0.5)
    # stored as (in, out): equivalent to torch weight (out, in) transposed
    w1 = jax.random.uniform(k1, (d_model, dim_ff), dtype, -bound1, bound1)
    b1 = jax.random.uniform(k2, (dim_ff,), dtype, -bound1, bound1)
    w2 = jax.random.uniform(k3, (dim_ff, d_model), dtype, -bound2, bound2)
    b2 = jax.random.uniform(k4, (d_model,), dtype, -bound2, bound2)
    return w1, b1, w2, b2


if __name__ == "__main__":
    # Small shapes consistent with the module: (batch, seq, d_model).
    batch, seq, d_model, dim_ff = 2, 8, 32, 256
    key = jax.random.PRNGKey(0)
    kx, kp = jax.random.split(key)

    x = jax.random.normal(kx, (batch, seq, d_model), jnp.float32)
    w1, b1, w2, b2 = _init_params(kp, d_model, dim_ff)

    # pure-JAX reference (dropout is unused in the torch forward pass)
    ref = jnp.maximum(x @ w1 + b1, 0.0) @ w2 + b2

    # 1) Exact f32 compute path; small tiles exercise the multi-step dim_ff
    #    reduction and the multi-M-tile (2-tile) path.
    out_f32 = jax.block_until_ready(
        feed_forward(x, w1, b1, w2, b2, tile_m=128, tile_ff=128,
                     compute_dtype=None))
    assert out_f32.shape == (batch, seq, d_model)
    assert jnp.allclose(out_f32, ref, atol=1e-4, rtol=1e-4)

    # 2) Default bf16-compute / f32-accumulate path (looser tolerance).
    out_bf = jax.block_until_ready(feed_forward(x, w1, b1, w2, b2, tile_ff=128))
    assert jnp.allclose(out_bf, ref, atol=7.5e-2, rtol=7.5e-2)

    # 3) Ragged token count (M = 15) + bf16 output dtype: exercises M padding
    #    and the scratch-accumulator kernel variant.
    x_r = jax.random.normal(kp, (3, 5, d_model), jnp.float32).astype(jnp.bfloat16)
    out_r = jax.block_until_ready(feed_forward(x_r, w1, b1, w2, b2, tile_ff=128))
    ref_r = jnp.maximum(x_r.astype(jnp.float32) @ w1 + b1, 0.0) @ w2 + b2
    assert out_r.dtype == jnp.bfloat16
    assert jnp.allclose(out_r.astype(jnp.float32), ref_r, atol=7.5e-2, rtol=7.5e-2)

    print("KERNEL_OK")
</pallas_src>

<mosaic_0001>
module attributes {stable_mosaic.version = 11 : i64} {
  func.func @_ff_kernel_f32out(%arg0: i32, %arg1: i32, %arg2: memref<8x32xf32, #tpu.memory_space<vmem>>, %arg3: memref<32x128xf32, #tpu.memory_space<vmem>>, %arg4: memref<1x128xf32, #tpu.memory_space<vmem>>, %arg5: memref<128x32xf32, #tpu.memory_space<vmem>>, %arg6: memref<1x32xf32, #tpu.memory_space<vmem>>, %arg7: memref<8x32xf32, #tpu.memory_space<vmem>>) attributes {dimension_semantics = [#tpu.dimension_semantics<parallel>, #tpu.dimension_semantics<arbitrary>], iteration_bounds = array<i64: 2, 2>, scalar_prefetch = 0 : i64, scratch_operands = 0 : i64, tpu.core_type = #tpu.core_type<tc>, window_params = [{transform_indices = @transform_0, window_bounds = array<i64: 8, 32>}, {transform_indices = @transform_1, window_bounds = array<i64: 32, 128>}, {transform_indices = @transform_2, window_bounds = array<i64: 1, 128>}, {transform_indices = @transform_3, window_bounds = array<i64: 128, 32>}, {pipeline_mode = #tpu.pipeline_mode<synchronous>, transform_indices = @transform_4, window_bounds = array<i64: 1, 32>}, {transform_indices = @transform_5, window_bounds = array<i64: 8, 32>}]} {
    %c0 = arith.constant 0 : index
    %c0_0 = arith.constant 0 : index
    %0 = vector.load %arg2[%c0, %c0_0] : memref<8x32xf32, #tpu.memory_space<vmem>>, vector<8x32xf32>
    %c0_1 = arith.constant 0 : index
    %c0_2 = arith.constant 0 : index
    %1 = vector.load %arg3[%c0_1, %c0_2] : memref<32x128xf32, #tpu.memory_space<vmem>>, vector<32x128xf32>
    %cst = arith.constant dense<0.000000e+00> : vector<8x128xf32>
    %2 = tpu.matmul %0, %1, %cst {dimension_numbers = #tpu.dot_dimension_numbers<[1], [0], [0], [1], [0, 0, 1, 1], [], []>} : vector<8x32xf32>, vector<32x128xf32>, vector<8x128xf32> -> vector<8x128xf32>
    %c0_3 = arith.constant 0 : index
    %c0_4 = arith.constant 0 : index
    %3 = vector.load %arg4[%c0_3, %c0_4] : memref<1x128xf32, #tpu.memory_space<vmem>>, vector<1x128xf32>
    %4 = vector.broadcast %3 : vector<1x128xf32> to vector<8x128xf32>
    %5 = arith.addf %2, %4 : vector<8x128xf32>
    %cst_5 = arith.constant 0.000000e+00 : f32
    %6 = vector.broadcast %cst_5 : f32 to vector<8x128xf32>
    %7 = arith.maximumf %5, %6 : vector<8x128xf32>
    %c0_6 = arith.constant 0 : index
    %c0_7 = arith.constant 0 : index
    %8 = vector.load %arg5[%c0_6, %c0_7] : memref<128x32xf32, #tpu.memory_space<vmem>>, vector<128x32xf32>
    %cst_8 = arith.constant dense<0.000000e+00> : vector<8x32xf32>
    %9 = tpu.matmul %7, %8, %cst_8 {dimension_numbers = #tpu.dot_dimension_numbers<[1], [0], [0], [1], [0, 0, 1, 1], [], []>} : vector<8x128xf32>, vector<128x32xf32>, vector<8x32xf32> -> vector<8x32xf32>
    %c0_i32 = arith.constant 0 : i32
    %10 = arith.cmpi eq, %arg1, %c0_i32 : i32
    %11 = arith.extui %10 : i1 to i32
    %c0_i32_9 = arith.constant 0 : i32
    %12 = arith.cmpi ne, %11, %c0_i32_9 : i32
    scf.if %12 {
      %c0_13 = arith.constant 0 : index
      %c0_14 = arith.constant 0 : index
      %19 = vector.load %arg7[%c0_13, %c0_14] : memref<8x32xf32, #tpu.memory_space<vmem>>, vector<8x32xf32>
      tpu.vector_store %arg7[%c0_13, %c0_14], %9 {strides = array<i32>} : memref<8x32xf32, #tpu.memory_space<vmem>>, vector<8x32xf32>,
    } else {
    }
    %c0_i32_10 = arith.constant 0 : i32
    %13 = arith.cmpi sgt, %arg1, %c0_i32_10 : i32
    %14 = arith.extui %13 : i1 to i32
    %c0_i32_11 = arith.constant 0 : i32
    %15 = arith.cmpi ne, %14, %c0_i32_11 : i32
    scf.if %15 {
      %c0_13 = arith.constant 0 : index
      %c0_14 = arith.constant 0 : index
      %19 = vector.load %arg7[%c0_13, %c0_14] : memref<8x32xf32, #tpu.memory_space<vmem>>, vector<8x32xf32>
      %20 = arith.addf %19, %9 : vector<8x32xf32>
      %c0_15 = arith.constant 0 : index
      %c0_16 = arith.constant 0 : index
      %21 = vector.load %arg7[%c0_15, %c0_16] : memref<8x32xf32, #tpu.memory_space<vmem>>, vector<8x32xf32>
      tpu.vector_store %arg7[%c0_15, %c0_16], %20 {strides = array<i32>} : memref<8x32xf32, #tpu.memory_space<vmem>>, vector<8x32xf32>,
    } else {
    }
    %c1_i32 = arith.constant 1 : i32
    %16 = arith.cmpi eq, %arg1, %c1_i32 : i32
    %17 = arith.extui %16 : i1 to i32
    %c0_i32_12 = arith.constant 0 : i32
    %18 = arith.cmpi ne, %17, %c0_i32_12 : i32
    scf.if %18 {
      %c0_13 = arith.constant 0 : index
      %c0_14 = arith.constant 0 : index
      %19 = vector.load %arg7[%c0_13, %c0_14] : memref<8x32xf32, #tpu.memory_space<vmem>>, vector<8x32xf32>
      %c0_15 = arith.constant 0 : index
      %c0_16 = arith.constant 0 : index
      %20 = vector.load %arg6[%c0_15, %c0_16] : memref<1x32xf32, #tpu.memory_space<vmem>>, vector<1x32xf32>
      %21 = vector.broadcast %20 : vector<1x32xf32> to vector<8x32xf32>
      %22 = arith.addf %19, %21 : vector<8x32xf32>
      %c0_17 = arith.constant 0 : index
      %c0_18 = arith.constant 0 : index
      %23 = vector.load %arg7[%c0_17, %c0_18] : memref<8x32xf32, #tpu.memory_space<vmem>>, vector<8x32xf32>
      tpu.vector_store %arg7[%c0_17, %c0_18], %22 {strides = array<i32>} : memref<8x32xf32, #tpu.memory_space<vmem>>, vector<8x32xf32>,
    } else {
    }
    return
  }
  func.func @transform_0(%arg0: i32, %arg1: i32) -> (i32, i32) {
    %c0_i32 = arith.constant 0 : i32
    %c0_i32_0 = arith.constant 0 : i32
    return %arg0, %c0_i32 : i32, i32
  }
  func.func @transform_1(%arg0: i32, %arg1: i32) -> (i32, i32) {
    %c0_i32 = arith.constant 0 : i32
    %c0_i32_0 = arith.constant 0 : i32
    return %c0_i32, %arg1 : i32, i32
  }
  func.func @transform_2(%arg0: i32, %arg1: i32) -> (i32, i32) {
    %c0_i32 = arith.constant 0 : i32
    %c0_i32_0 = arith.constant 0 : i32
    return %c0_i32, %arg1 : i32, i32
  }
  func.func @transform_3(%arg0: i32, %arg1: i32) -> (i32, i32) {
    %c0_i32 = arith.constant 0 : i32
    %c0_i32_0 = arith.constant 0 : i32
    return %arg1, %c0_i32 : i32, i32
  }
  func.func @transform_4(%arg0: i32, %arg1: i32) -> (i32, i32) {
    %c0_i32 = arith.constant 0 : i32
    %c0_i32_0 = arith.constant 0 : i32
    %c0_i32_1 = arith.constant 0 : i32
    return %c0_i32, %c0_i32_0 : i32, i32
  }
  func.func @transform_5(%arg0: i32, %arg1: i32) -> (i32, i32) {
    %c0_i32 = arith.constant 0 : i32
    %c0_i32_0 = arith.constant 0 : i32
    return %arg0, %c0_i32 : i32, i32
  }
}

</mosaic_0001>

<llo_original>
// kernel: tpu_custom_call.1
$region0: #{tpu_custom_call.1}
  #allocation0 [shape = 'u32[]', space=smem, size = 0x4, offset = 0x4, fixed_abs, tag = 'smem constant byte address 0x4 - core index']
  #allocation1 [shape = 'u32[144,128]{1,0:T(1,128)}', space=vmem, size = 0x12000, scoped, tag = 'internal scratch']
  %s0 = inlined_call_operand.vmem [shape: f32[16,32], index: 0, kind: input, shape index: {}]
  %s1 = inlined_call_operand.vmem [shape: f32[32,256], index: 1, kind: input, shape index: {}]
  %s2 = inlined_call_operand.vmem [shape: f32[1,256], index: 2, kind: input, shape index: {}]
  %s3 = inlined_call_operand.vmem [shape: f32[256,32], index: 3, kind: input, shape index: {}]
  %s4 = inlined_call_operand.vmem [shape: f32[1,32], index: 4, kind: input, shape index: {}]
  %s5 = inlined_call_operand.hbm [shape: f32[16,32], index: 5, kind: output, shape index: {}]
  %s6 = sld [smem:[#allocation0]]
  $region103: #{tpu_custom_call.1} parent=0
    _
  %s8 = ssub.s32 1, %s6
  %s9 = scalar_select 0, %s8, %s6
  $region1: #{tpu_custom_call.1} parent=0
    #allocation2 [shape = 'u8[32768]{0}', space=vmem, size = 0x8000, scoped, tag = 'input window, operand 1']
    #allocation3 [shape = 'u8[8192]{0}', space=vmem, size = 0x2000, scoped, tag = 'output window, operand 0']
    #allocation4 [shape = 's32[2]{0}', space=sflag, size = 0x8, scoped, tag = 'scoped memory for tpu_custom_call.1']
    %10 = vsyncpa [#allocation4], 0
    %s11 = scalar_lea.sflag [#allocation4], 1
    %12 = vsyncpa %s11, 0
    loop: start=0, step=1, limit=6
    $region2: #{tpu_custom_call.1} parent=1 // loop_pre_header
      _
    $region3: #{tpu_custom_call.1} parent=1 // loop_header
      %s14 = sphi 0, %s18
      %p15 = scmp.ge.s32.totalorder %s14, 6
      %s21 = sphi 0, %s33
      %s22 = sphi 0, %s29
      %s23 = sphi 0, %s21
      %s24 = sphi 0, %s22
      %s25 = sphi 0, %s23
      %s26 = sphi 0, %s24
      %s36 = sphi 0, %s38
      %s39 = sphi 0, %s36
      %s40 = sphi 0, %s39
      %s56 = sphi 0, %s40
      %s62 = sphi 0, %s64
      %s65 = sphi 0, %s62
      %s66 = sphi 0, %s65
      %s82 = sphi 0, %s66
      %s88 = sphi 0, %s90
      %s91 = sphi 0, %s88
      %s92 = sphi 0, %s91
      %s108 = sphi 0, %s92
      %s114 = sphi 0, %s116
      %s117 = sphi 0, %s114
      %s118 = sphi 0, %s117
      %s134 = sphi 0, %s118
      %s138 = sphi 0, %s138
      %s140 = sphi 0, %s138
      %s141 = sphi 0, %s140
      %s155 = sphi 0, %s141
      %s161 = sphi 0, %s163
      %s164 = sphi 0, %s161
      %s165 = sphi 0, %s164
      %s181 = sphi 0, %s165
    $region4: #{tpu_custom_call.1} parent=1 // loop_header_branch
      %17 = sbr.rel (%p15) target = $region8
    $region5: #{tpu_custom_call.1} parent=1 // loop_body
      %s19 = ssub.s32 %s14, 1
      %s20 = ssub.s32 %s14, 2
      %s27 = sadd.s32 1, %s22
      %p28 = scmp.ge.s32.totalorder %s27, 2
      %s29 = scalar_select %p28, 0, %s27
      %s30 = sadd.s32 1, %s21
      %s31 = scalar_select %p28, %s30, %s21
      %p32 = scmp.ge.s32.totalorder %s31, 2
      %s33 = scalar_select %p32, 0, %s31
      %s34 = ssub.s32 %s21, %s33
      %p35 = scmp.eq.s32.totalorder %s34, 0
      %s37 = sadd.s32 %s36, 1
      %s38 = scalar_select %p35, %s36, %s37
      %p41 = pneg %p35
      %p42 = scmp.eq.s32.totalorder %s14, 3
      %p43 = por %p41, %p42
      %p44 = scmp.ne.s32.totalorder %s36, %s39
      %p45 = scmp.eq.s32.totalorder %s14, 0
      %p46 = por %p44, %p45
      %p47 = scmp.ne.s32.totalorder %s36, %s39
      %p48 = scmp.eq.s32.totalorder %s19, 3
      %p49 = por %p47, %p48
      %p50 = scmp.ne.s32.totalorder %s39, %s40
      %p51 = scmp.eq.s32.totalorder %s19, 0
      %p52 = por %p50, %p51
      %p53 = scmp.ne.s32.totalorder %s39, %s40
      %p54 = scmp.eq.s32.totalorder %s20, 3
      %p55 = por %p53, %p54
      %p57 = scmp.ne.s32.totalorder %s40, %s56
      %p58 = scmp.eq.s32.totalorder %s20, 0
      %p59 = por %p57, %p58
      %s60 = ssub.s32 %s22, %s29
      %p61 = scmp.eq.s32.totalorder %s60, 0
      %s63 = sadd.s32 %s62, 1
      %s64 = scalar_select %p61, %s62, %s63
      %p67 = pneg %p61
      %p68 = scmp.eq.s32.totalorder %s14, 3
      %p69 = por %p67, %p68
      %p70 = scmp.ne.s32.totalorder %s62, %s65
      %p71 = scmp.eq.s32.totalorder %s14, 0
      %p72 = por %p70, %p71
      %p73 = scmp.ne.s32.totalorder %s62, %s65
      %p74 = scmp.eq.s32.totalorder %s19, 3
      %p75 = por %p73, %p74
      %p76 = scmp.ne.s32.totalorder %s65, %s66
      %p77 = scmp.eq.s32.totalorder %s19, 0
      %p78 = por %p76, %p77
      %p79 = scmp.ne.s32.totalorder %s65, %s66
      %p80 = scmp.eq.s32.totalorder %s20, 3
      %p81 = por %p79, %p80
      %p83 = scmp.ne.s32.totalorder %s66, %s82
      %p84 = scmp.eq.s32.totalorder %s20, 0
      %p85 = por %p83, %p84
      %s86 = ssub.s32 %s22, %s29
      %p87 = scmp.eq.s32.totalorder %s86, 0
      %s89 = sadd.s32 %s88, 1
      %s90 = scalar_select %p87, %s88, %s89
      %p93 = pneg %p87
      %p94 = scmp.eq.s32.totalorder %s14, 3
      %p95 = por %p93, %p94
      %p96 = scmp.ne.s32.totalorder %s88, %s91
      %p97 = scmp.eq.s32.totalorder %s14, 0
      %p98 = por %p96, %p97
      %p99 = scmp.ne.s32.totalorder %s88, %s91
      %p100 = scmp.eq.s32.totalorder %s19, 3
      %p101 = por %p99, %p100
      %p102 = scmp.ne.s32.totalorder %s91, %s92
      %p103 = scmp.eq.s32.totalorder %s19, 0
      %p104 = por %p102, %p103
      %p105 = scmp.ne.s32.totalorder %s91, %s92
      %p106 = scmp.eq.s32.totalorder %s20, 3
      %p107 = por %p105, %p106
      %p109 = scmp.ne.s32.totalorder %s92, %s108
      %p110 = scmp.eq.s32.totalorder %s20, 0
      %p111 = por %p109, %p110
      %s112 = ssub.s32 %s22, %s29
      %p113 = scmp.eq.s32.totalorder %s112, 0
      %s115 = sadd.s32 %s114, 1
      %s116 = scalar_select %p113, %s114, %s115
      %p119 = pneg %p113
      %p120 = scmp.eq.s32.totalorder %s14, 3
      %p121 = por %p119, %p120
      %p122 = scmp.ne.s32.totalorder %s114, %s117
      %p123 = scmp.eq.s32.totalorder %s14, 0
      %p124 = por %p122, %p123
      %p125 = scmp.ne.s32.totalorder %s114, %s117
      %p126 = scmp.eq.s32.totalorder %s19, 3
      %p127 = por %p125, %p126
      %p128 = scmp.ne.s32.totalorder %s117, %s118
      %p129 = scmp.eq.s32.totalorder %s19, 0
      %p130 = por %p128, %p129
      %p131 = scmp.ne.s32.totalorder %s117, %s118
      %p132 = scmp.eq.s32.totalorder %s20, 3
      %p133 = por %p131, %p132
      %p135 = scmp.ne.s32.totalorder %s118, %s134
      %p136 = scmp.eq.s32.totalorder %s20, 0
      %p137 = por %p135, %p136
      %s139 = sadd.s32 %s138, 1
      %p142 = scmp.eq.s32.totalorder %s14, 3
      %p143 = scmp.ne.s32.totalorder %s138, %s140
      %p144 = scmp.eq.s32.totalorder %s14, 0
      %p145 = por %p143, %p144
      %p146 = scmp.ne.s32.totalorder %s138, %s140
      %p147 = scmp.eq.s32.totalorder %s19, 3
      %p148 = por %p146, %p147
      %p149 = scmp.ne.s32.totalorder %s140, %s141
      %p150 = scmp.eq.s32.totalorder %s19, 0
      %p151 = por %p149, %p150
      %p152 = scmp.ne.s32.totalorder %s140, %s141
      %p153 = scmp.eq.s32.totalorder %s20, 3
      %p154 = por %p152, %p153
      %p156 = scmp.ne.s32.totalorder %s141, %s155
      %p157 = scmp.eq.s32.totalorder %s20, 0
      %p158 = por %p156, %p157
      %s159 = ssub.s32 %s21, %s33
      %p160 = scmp.eq.s32.totalorder %s159, 0
      %s162 = sadd.s32 %s161, 1
      %s163 = scalar_select %p160, %s161, %s162
      %p166 = pneg %p160
      %p167 = scmp.eq.s32.totalorder %s14, 3
      %p168 = por %p166, %p167
      %p169 = scmp.ne.s32.totalorder %s161, %s164
      %p170 = scmp.eq.s32.totalorder %s14, 0
      %p171 = por %p169, %p170
      %p172 = scmp.ne.s32.totalorder %s161, %s164
      %p173 = scmp.eq.s32.totalorder %s19, 3
      %p174 = por %p172, %p173
      %p175 = scmp.ne.s32.totalorder %s164, %s165
      %p176 = scmp.eq.s32.totalorder %s19, 0
      %p177 = por %p175, %p176
      %p178 = scmp.ne.s32.totalorder %s164, %s165
      %p179 = scmp.eq.s32.totalorder %s20, 3
      %p180 = por %p178, %p179
      %p182 = scmp.ne.s32.totalorder %s165, %s181
      %p183 = scmp.eq.s32.totalorder %s20, 0
      %p184 = por %p182, %p183
      %p185 = scmp.le.s32.totalorder 1, %s14
      %p186 = scmp.lt.s32.totalorder %s14, 5
      %p187 = pnand %p185, %p186
      %p188 = pneg %p187
      // Predicated region
      $region9: #{tpu_custom_call.1} parent=5 // pred_check
        _
      $region10: #{tpu_custom_call.1} parent=5 // pred_check_branch
        %190 = sbr.rel (%p187) target = $region12
      $region11: #{tpu_custom_call.1} parent=5 // pred_region
        %s191 = ssub.s32 %s14, 1
        // Predicated region
        $region13: #{tpu_custom_call.1} parent=11 // pred_check
          %p192 = pneg %p151
        $region14: #{tpu_custom_call.1} parent=11 // pred_check_branch
          %194 = sbr.rel (%p192) target = $region16
        $region15: #{tpu_custom_call.1} parent=11 // pred_region
          _
        $region16: #{tpu_custom_call.1} parent=11 // pred_fallthru
          _
      $region12: #{tpu_custom_call.1} parent=5 // pred_fallthru
        _
      %p195 = scmp.lt.s32.totalorder %s14, 4
      // Predicated region
      $region17: #{tpu_custom_call.1} parent=5 // pred_check
        %p196 = pneg %p195
      $region18: #{tpu_custom_call.1} parent=5 // pred_check_branch
        %198 = sbr.rel (%p196) target = $region20
      $region19: #{tpu_custom_call.1} parent=5 // pred_region
        // Predicated region
        $region21: #{tpu_custom_call.1} parent=19 // pred_check
          %p199 = pneg %p46
        $region22: #{tpu_custom_call.1} parent=19 // pred_check_branch
          %201 = sbr.rel (%p199) target = $region24
        $region23: #{tpu_custom_call.1} parent=19 // pred_region
          %p202 = scmp.lt.s32.totalorder %s21, 1
          %s203 = scalar_select %p202, %s21, 1
          %s204 = smul.addr %s203, 8
          %s205 = scalar_lea.vmem %s0, %s204
        $region24: #{tpu_custom_call.1} parent=19 // pred_fallthru
          _
        // Predicated region
        $region25: #{tpu_custom_call.1} parent=19 // pred_check
          %p206 = pneg %p72
        $region26: #{tpu_custom_call.1} parent=19 // pred_check_branch
          %208 = sbr.rel (%p206) target = $region28
        $region27: #{tpu_custom_call.1} parent=19 // pred_region
          %s209 = sand.u32 %s62, 1
          %s210 = sand.u32 %s62, 1
          %s211 = smul.addr %s210, 32
          %s212 = scalar_lea.vmem [#allocation2], %s211
          %s213 = smul.addr %s22, 8
          %s214 = scalar_lea.vmem %s1, %s213
          // Predicated region
          $region29: #{tpu_custom_call.1} parent=27 // pred_check
            _
          $region30: #{tpu_custom_call.1} parent=27 // pred_check_branch
            %216 = sbr.rel (0) target = $region32
          $region31: #{tpu_custom_call.1} parent=27 // pred_region
            // Predicated region
            $region33: #{tpu_custom_call.1} parent=31 // pred_check
              _
            $region34: #{tpu_custom_call.1} parent=31 // pred_check_branch
              %218 = sbr.rel (0) target = $region36
            $region35: #{tpu_custom_call.1} parent=31 // pred_region
              // Predicated region
              $region48: #{tpu_custom_call.1} parent=35 // pred_check
                _
              $region49: #{tpu_custom_call.1} parent=35 // pred_check_branch
                %240 = sbr.rel (0) target = $region51
              $region50: #{tpu_custom_call.1} parent=35 // pred_region
                loop: start=0, step=1, limit=1
                $region52: #{tpu_custom_call.1} parent=50 // loop_pre_header
                  _
                $region53: #{tpu_custom_call.1} parent=50 // loop_header
                  %s242 = sphi 0, %s246
                  %p243 = scmp.ge.s32.totalorder %s242, 1
                  %s247 = sphi %s214, %s214
                  %s248 = sphi %s212, %s212
                $region54: #{tpu_custom_call.1} parent=50 // loop_header_branch
                  %245 = sbr.rel (%p243) target = $region58
                $region55: #{tpu_custom_call.1} parent=50 // loop_body
                  %v249 = vld [vmem:[%s247] sm:$0xff]
                  %250 = vst [vmem:[%s248] sm:$0xff] %v249
                  %v251 = vld [vmem:[%s247 + $0x10] sm:$0xff]
                  %252 = vst [vmem:[%s248 + $0x8] sm:$0xff] %v251
                  %v253 = vld [vmem:[%s247 + $0x20] sm:$0xff]
                  %254 = vst [vmem:[%s248 + $0x10] sm:$0xff] %v253
                  %v255 = vld [vmem:[%s247 + $0x30] sm:$0xff]
                  %256 = vst [vmem:[%s248 + $0x18] sm:$0xff] %v255
                $region56: #{tpu_custom_call.1} parent=50 // loop_footer
                  %s246 = sadd.s32 1, %s242
                $region57: #{tpu_custom_call.1} parent=50 // loop_footer_branch
                  %241 = sbr.rel target = $region53
                $region58: #{tpu_custom_call.1} parent=50 // loop_exit
                  _
              $region51: #{tpu_custom_call.1} parent=35 // pred_fallthru
                _
              // Predicated region
              $region59: #{tpu_custom_call.1} parent=35 // pred_check
                _
              $region60: #{tpu_custom_call.1} parent=35 // pred_check_branch
                %258 = sbr.rel target = $region62
              $region61: #{tpu_custom_call.1} parent=35 // pred_region
                _
              $region62: #{tpu_custom_call.1} parent=35 // pred_fallthru
                _
            $region36: #{tpu_custom_call.1} parent=31 // pred_fallthru
              _
            // Predicated region
            $region37: #{tpu_custom_call.1} parent=31 // pred_check
              _
            $region38: #{tpu_custom_call.1} parent=31 // pred_check_branch
              %220 = sbr.rel target = $region40
            $region39: #{tpu_custom_call.1} parent=31 // pred_region
              %s222 = ssub.s32 256, 1
              loop: start=0, step=1, limit=1
              $region41: #{tpu_custom_call.1} parent=39 // loop_pre_header
                _
              $region42: #{tpu_custom_call.1} parent=39 // loop_header
                %s224 = sphi 0, %s228
                %p225 = scmp.ge.s32.totalorder %s224, 1
                %s229 = sphi %s214, %s214
                %s230 = sphi %s212, %s212
              $region43: #{tpu_custom_call.1} parent=39 // loop_header_branch
                %227 = sbr.rel (%p225) target = $region47
              $region44: #{tpu_custom_call.1} parent=39 // loop_body
                %v231 = vld [vmem:[%s229] sm:%s222]
                %232 = vst [vmem:[%s230] sm:%s222] %v231
                %v233 = vld [vmem:[%s229 + $0x10] sm:%s222]
                %234 = vst [vmem:[%s230 + $0x8] sm:%s222] %v233
                %v235 = vld [vmem:[%s229 + $0x20] sm:%s222]
                %236 = vst [vmem:[%s230 + $0x10] sm:%s222] %v235
                %v237 = vld [vmem:[%s229 + $0x30] sm:%s222]
                %238 = vst [vmem:[%s230 + $0x18] sm:%s222] %v237
              $region45: #{tpu_custom_call.1} parent=39 // loop_footer
                %s228 = sadd.s32 1, %s224
              $region46: #{tpu_custom_call.1} parent=39 // loop_footer_branch
                %223 = sbr.rel target = $region42
              $region47: #{tpu_custom_call.1} parent=39 // loop_exit
                _
            $region40: #{tpu_custom_call.1} parent=31 // pred_fallthru
              _
          $region32: #{tpu_custom_call.1} parent=27 // pred_fallthru
            _
          %259 = vnop
        $region28: #{tpu_custom_call.1} parent=19 // pred_fallthru
          _
        // Predicated region
        $region63: #{tpu_custom_call.1} parent=19 // pred_check
          %p260 = pneg %p98
        $region64: #{tpu_custom_call.1} parent=19 // pred_check_branch
          %262 = sbr.rel (%p260) target = $region66
        $region65: #{tpu_custom_call.1} parent=19 // pred_region
          %p263 = scmp.lt.s32.totalorder %s22, 1
          %s264 = scalar_select %p263, %s22, 1
          %s265 = scalar_lea.vmem %s2, %s264
        $region66: #{tpu_custom_call.1} parent=19 // pred_fallthru
          _
        // Predicated region
        $region67: #{tpu_custom_call.1} parent=19 // pred_check
          %p266 = pneg %p124
        $region68: #{tpu_custom_call.1} parent=19 // pred_check_branch
          %268 = sbr.rel (%p266) target = $region70
        $region69: #{tpu_custom_call.1} parent=19 // pred_region
          %s269 = smul.u32 16, %s22
          %p270 = scmp.lt.s32.totalorder %s269, 31
          %s271 = scalar_select %p270, %s269, 31
          %s272 = smul.addr %s271, 8
          %s273 = scalar_lea.vmem %s3, %s272
          %s274 = smul.u32 16, %s22
        $region70: #{tpu_custom_call.1} parent=19 // pred_fallthru
          _
      $region20: #{tpu_custom_call.1} parent=5 // pred_fallthru
        _
      %p275 = scmp.le.s32.totalorder 1, %s14
      %p276 = scmp.lt.s32.totalorder %s14, 5
      %p277 = pnand %p275, %p276
      %p278 = pneg %p277
      // Predicated region
      $region71: #{tpu_custom_call.1} parent=5 // pred_check
        _
      $region72: #{tpu_custom_call.1} parent=5 // pred_check_branch
        %280 = sbr.rel (%p277) target = $region74
      $region73: #{tpu_custom_call.1} parent=5 // pred_region
        %s281 = ssub.s32 %s14, 1
        %s282 = sand.u32 %s65, 1
        %s283 = sand.u32 %s65, 1
        %s284 = smul.addr %s283, 32
        %s285 = scalar_lea.vmem [#allocation2], %s284
        // Predicated region
        $region75: #{tpu_custom_call.1} parent=73 // pred_check
          %p286 = pneg %p78
        $region76: #{tpu_custom_call.1} parent=73 // pred_check_branch
          %288 = sbr.rel (%p286) target = $region78
        $region77: #{tpu_custom_call.1} parent=73 // pred_region
          _
        $region78: #{tpu_custom_call.1} parent=73 // pred_fallthru
          _
        %p289 = scmp.lt.s32.totalorder %s23, 1
        %s290 = scalar_select %p289, %s23, 1
        %s291 = smul.addr %s290, 8
        %s292 = scalar_lea.vmem %s0, %s291
        %p293 = pneg %p52
        %p294 = pneg %p49
        %s295 = sand.u32 %s65, 1
        %s296 = sand.u32 %s65, 1
        %s297 = smul.addr %s296, 32
        %s298 = scalar_lea.vmem [#allocation2], %s297
        %p299 = pneg %p78
        %p300 = pneg %p75
        %p301 = scmp.lt.s32.totalorder %s24, 1
        %s302 = scalar_select %p301, %s24, 1
        %s303 = scalar_lea.vmem %s2, %s302
        %p304 = pneg %p104
        %p305 = pneg %p101
        %s306 = smul.u32 16, %s24
        %p307 = scmp.lt.s32.totalorder %s306, 31
        %s308 = scalar_select %p307, %s306, 31
        %s309 = smul.addr %s308, 8
        %s310 = scalar_lea.vmem %s3, %s309
        %p311 = pneg %p130
        %p312 = pneg %p127
        %p313 = pneg %p151
        %p314 = pneg %p148
        %p315 = pneg %p177
        %p316 = pneg %p174
        %s317 = sand.u32 %s164, 1
        %s318 = scalar_lea.sflag [#allocation4], %s317
        %s319 = sand.u32 %s164, 1
        %s320 = smul.addr %s319, 8
        %s321 = scalar_lea.vmem [#allocation3], %s320
        %p322 = scmp.lt.s32.totalorder %s23, 1
        %s323 = scalar_select %p322, %s23, 1
        %s324 = smul.addr %s323, 8
        %s325 = scalar_lea.vmem %s0, %s324
        %p326 = scmp.lt.s32.totalorder %s24, 1
        %s327 = scalar_select %p326, %s24, 1
        %s328 = scalar_lea.vmem %s2, %s327
        %s329 = smul.u32 16, %s24
        %p330 = scmp.lt.s32.totalorder %s329, 31
        %s331 = scalar_select %p330, %s329, 31
        %s332 = smul.addr %s331, 8
        %s333 = scalar_lea.vmem %s3, %s332
        %s334 = smul.u32 16, %s24
        %v335 = vld [vmem:[%s325] sm:$0xff]
        %v336 = vld [vmem:[%s285] sm:$0xff]
        %v337 = vld [vmem:[%s285 + $0x8] sm:$0xff]
        %v338 = vld [vmem:[%s285 + $0x10] sm:$0xff]
        %v339 = vld [vmem:[%s285 + $0x18] sm:$0xff]
        %v340 = vld [vmem:[%s328] sm:$0x1]
        %v342 = vlaneseq
        %v343 = vshrl.u32 %v342, 7
        %v344 = vsub.s32 0, %v343
        %v345 = vrot.slane %v340, %v344
        %vm347 = vcmask 261120
        %v349 = vsel %vm347, %v335, 0
        %351 = vmatprep.subr.mxu0 0.0
        %352 = vmatpush1.msra.mxu0 0.0
        %353 = vmatprep.subr.mxu0 0.0
        %354 = vmatpush1.msra.mxu0 0.0
        %355 = vmatprep.subr.mxu0 0.0
        %356 = vmatpush1.msra.mxu0 0.0
        %357 = vmatprep.subr.mxu0 0.0
        %358 = vmatpush1.msra.mxu0 0.0
        %359 = vmatprep.subr.mxu0 0.0
        %360 = vmatpush1.msra.mxu0 0.0
        %361 = vmatprep.subr.mxu0 0.0
        %362 = vmatpush1.msra.mxu0 0.0
        %363 = vmatprep.subr.mxu0 0.0
        %364 = vmatpush1.msra.mxu0 0.0
        %365 = vmatprep.subr.mxu0 0.0
        %366 = vmatpush1.msra.mxu0 0.0
        %367 = vmatprep.subr.mxu0 0.0
        %368 = vmatpush1.msra.mxu0 0.0
        %369 = vmatprep.subr.mxu0 0.0
        %370 = vmatpush1.msra.mxu0 0.0
        %371 = vmatprep.subr.mxu0 0.0
        %372 = vmatpush1.msra.mxu0 0.0
        %373 = vmatprep.subr.mxu0 0.0
        %374 = vmatpush1.msra.mxu0 0.0
        %375 = vmatprep.subr.mxu0 0.0
        %376 = vmatpush1.msra.mxu0 %v339
        %377 = vmatprep.subr.mxu0 0.0
        %378 = vmatpush1.msra.mxu0 %v338
        %379 = vmatprep.subr.mxu0 0.0
        %380 = vmatpush1.msra.mxu0 %v337
        %381 = vmatprep.subr.mxu0 0.0
        %382 = vmatpush1.msra.mxu0 %v336
        %383 = vmatprep.subr.mxu0 0.0
        %384 = vmatpush2.msra.mxu0 0.0
        %385 = vmatprep.subr.mxu0 0.0
        %386 = vmatpush2.msra.mxu0 0.0
        %387 = vmatprep.subr.mxu0 0.0
        %388 = vmatpush2.msra.mxu0 0.0
        %389 = vmatprep.subr.mxu0 0.0
        %390 = vmatpush2.msra.mxu0 0.0
        %391 = vmatprep.subr.mxu0 0.0
        %392 = vmatpush2.msra.mxu0 0.0
        %393 = vmatprep.subr.mxu0 0.0
        %394 = vmatpush2.msra.mxu0 0.0
        %395 = vmatprep.subr.mxu0 0.0
        %396 = vmatpush2.msra.mxu0 0.0
        %397 = vmatprep.subr.mxu0 0.0
        %398 = vmatpush2.msra.mxu0 0.0
        %399 = vmatprep.subr.mxu0 0.0
        %400 = vmatpush2.msra.mxu0 0.0
        %401 = vmatprep.subr.mxu0 0.0
        %402 = vmatpush2.msra.mxu0 0.0
        %403 = vmatprep.subr.mxu0 0.0
        %404 = vmatpush2.msra.mxu0 0.0
        %405 = vmatprep.subr.mxu0 0.0
        %406 = vmatpush2.msra.mxu0 0.0
        %407 = vmatprep.subr.mxu0 0.0
        %408 = vmatpush2.msra.mxu0 0.0
        %409 = vmatprep.subr.mxu0 0.0
        %410 = vmatpush2.msra.mxu0 0.0
        %411 = vmatprep.subr.mxu0 0.0
        %412 = vmatpush2.msra.mxu0 0.0
        %413 = vmatprep.subr.mxu0 0.0
        %414 = vmatpush2.msra.mxu0 0.0
        %415 = vmatprep.mubr.f32.mxu0 0.0
        %416 = vmatmul.mubr.f32.gmra.mxu0 %v349
        %v417 = vpop.f32.mrf.mxu0
        %v418 = vadd.f32 %v345, %v417
        %v419 = vpop.f32.mrf.mxu0
        %420 = vdwg.mxu0
        %v421 = vmax.f32 %v418, 0.0
        %v422 = vld [vmem:[%s333] sm:$0xff]
        %v423 = vld [vmem:[%s333 + $0x8] sm:$0xff]
        %v424 = vld [vmem:[%s333 + $0x10] sm:$0xff]
        %v425 = vld [vmem:[%s333 + $0x18] sm:$0xff]
        %v426 = vld [vmem:[%s333 + $0x20] sm:$0xff]
        %v427 = vld [vmem:[%s333 + $0x28] sm:$0xff]
        %v428 = vld [vmem:[%s333 + $0x30] sm:$0xff]
        %v429 = vld [vmem:[%s333 + $0x38] sm:$0xff]
        %v430 = vld [vmem:[%s333 + $0x40] sm:$0xff]
        %v431 = vld [vmem:[%s333 + $0x48] sm:$0xff]
        %v432 = vld [vmem:[%s333 + $0x50] sm:$0xff]
        %v433 = vld [vmem:[%s333 + $0x58] sm:$0xff]
        %v434 = vld [vmem:[%s333 + $0x60] sm:$0xff]
        %v435 = vld [vmem:[%s333 + $0x68] sm:$0xff]
        %v436 = vld [vmem:[%s333 + $0x70] sm:$0xff]
        %v437 = vld [vmem:[%s333 + $0x78] sm:$0xff]
        %438 = vmatprep.subr.mxu0 0.0
        %439 = vmatpush1.msra.mxu0 %v437
        %440 = vmatprep.subr.mxu0 0.0
        %441 = vmatpush1.msra.mxu0 %v436
        %442 = vmatprep.subr.mxu0 0.0
        %443 = vmatpush1.msra.mxu0 %v435
        %444 = vmatprep.subr.mxu0 0.0
        %445 = vmatpush1.msra.mxu0 %v434
        %446 = vmatprep.subr.mxu0 0.0
        %447 = vmatpush1.msra.mxu0 %v433
        %448 = vmatprep.subr.mxu0 0.0
        %449 = vmatpush1.msra.mxu0 %v432
        %450 = vmatprep.subr.mxu0 0.0
        %451 = vmatpush1.msra.mxu0 %v431
        %452 = vmatprep.subr.mxu0 0.0
        %453 = vmatpush1.msra.mxu0 %v430
        %454 = vmatprep.subr.mxu0 0.0
        %455 = vmatpush1.msra.mxu0 %v429
        %456 = vmatprep.subr.mxu0 0.0
        %457 = vmatpush1.msra.mxu0 %v428
        %458 = vmatprep.subr.mxu0 0.0
        %459 = vmatpush1.msra.mxu0 %v427
        %460 = vmatprep.subr.mxu0 0.0
        %461 = vmatpush1.msra.mxu0 %v426
        %462 = vmatprep.subr.mxu0 0.0
        %463 = vmatpush1.msra.mxu0 %v425
        %464 = vmatprep.subr.mxu0 0.0
        %465 = vmatpush1.msra.mxu0 %v424
        %466 = vmatprep.subr.mxu0 0.0
        %467 = vmatpush1.msra.mxu0 %v423
        %468 = vmatprep.subr.mxu0 0.0
        %469 = vmatpush1.msra.mxu0 %v422
        %470 = vmatprep.subr.mxu0 0.0
        %471 = vmatpush2.msra.mxu0 0.0
        %472 = vmatprep.subr.mxu0 0.0
        %473 = vmatpush2.msra.mxu0 0.0
        %474 = vmatprep.subr.mxu0 0.0
        %475 = vmatpush2.msra.mxu0 0.0
        %476 = vmatprep.subr.mxu0 0.0
        %477 = vmatpush2.msra.mxu0 0.0
        %478 = vmatprep.subr.mxu0 0.0
        %479 = vmatpush2.msra.mxu0 0.0
        %480 = vmatprep.subr.mxu0 0.0
        %481 = vmatpush2.msra.mxu0 0.0
        %482 = vmatprep.subr.mxu0 0.0
        %483 = vmatpush2.msra.mxu0 0.0
        %484 = vmatprep.subr.mxu0 0.0
        %485 = vmatpush2.msra.mxu0 0.0
        %486 = vmatprep.subr.mxu0 0.0
        %487 = vmatpush2.msra.mxu0 0.0
        %488 = vmatprep.subr.mxu0 0.0
        %489 = vmatpush2.msra.mxu0 0.0
        %490 = vmatprep.subr.mxu0 0.0
        %491 = vmatpush2.msra.mxu0 0.0
        %492 = vmatprep.subr.mxu0 0.0
        %493 = vmatpush2.msra.mxu0 0.0
        %494 = vmatprep.subr.mxu0 0.0
        %495 = vmatpush2.msra.mxu0 0.0
        %496 = vmatprep.subr.mxu0 0.0
        %497 = vmatpush2.msra.mxu0 0.0
        %498 = vmatprep.subr.mxu0 0.0
        %499 = vmatpush2.msra.mxu0 0.0
        %500 = vmatprep.subr.mxu0 0.0
        %501 = vmatpush2.msra.mxu0 0.0
        %502 = vmatprep.mubr.f32.mxu0 0.0
        %503 = vmatmul.mubr.f32.gmra.mxu0 %v421
        %v504 = vpop.f32.mrf.mxu0
        %v505 = vadd.f32 0.0, %v504
        %v506 = vpop.f32.mrf.mxu0
        %507 = vdwg.mxu0
        %p508 = scmp.eq.s32.totalorder %s24, 0
        // Predicated region
        $region79: #{tpu_custom_call.1} parent=73 // pred_check
          %p509 = pneg %p508
        $region80: #{tpu_custom_call.1} parent=73 // pred_check_branch
          %511 = sbr.rel (%p509) target = $region82
        $region81: #{tpu_custom_call.1} parent=73 // pred_region
          %512 = vst.msk [vmem:[%s321] sm:$0xff] %vm347, %v505
        $region82: #{tpu_custom_call.1} parent=73 // pred_fallthru
          _
        %p513 = scmp.gt.s32.totalorder %s24, 0
        // Predicated region
        $region83: #{tpu_custom_call.1} parent=73 // pred_check
          %p514 = pneg %p513
        $region84: #{tpu_custom_call.1} parent=73 // pred_check_branch
          %516 = sbr.rel (%p514) target = $region86
        $region85: #{tpu_custom_call.1} parent=73 // pred_region
          %v517 = vld [vmem:[%s321] sm:$0xff]
          %v518 = vadd.f32 %v517, %v505
          %519 = vst.msk [vmem:[%s321] sm:$0xff] %vm347, %v518
        $region86: #{tpu_custom_call.1} parent=73 // pred_fallthru
          _
        %p520 = scmp.eq.s32.totalorder %s24, 1
        // Predicated region
        $region87: #{tpu_custom_call.1} parent=73 // pred_check
          %p521 = pneg %p520
        $region88: #{tpu_custom_call.1} parent=73 // pred_check_branch
          %523 = sbr.rel (%p521) target = $region90
        $region89: #{tpu_custom_call.1} parent=73 // pred_region
          %v524 = vld [vmem:[%s321] sm:$0xff]
          %v525 = vld [vmem:[%s4] sm:$0x1]
          %v527 = vlaneseq
          %v528 = vshrl.u32 %v527, 7
          %v529 = vsub.s32 0, %v528
          %v530 = vrot.slane %v525, %v529
          %v532 = vadd.f32 %v524, %v530
          %533 = vst.msk [vmem:[%s321] sm:$0xff] %vm347, %v532
        $region90: #{tpu_custom_call.1} parent=73 // pred_fallthru
          _
        %s534 = sand.u32 %s164, 1
        %s535 = scalar_lea.sflag [#allocation4], %s534
        %s536 = sand.u32 %s164, 1
        %s537 = smul.addr %s536, 8
        %s538 = scalar_lea.vmem [#allocation3], %s537
        // Predicated region
        $region91: #{tpu_custom_call.1} parent=73 // pred_check
          %p539 = pneg %p174
        $region92: #{tpu_custom_call.1} parent=73 // pred_check_branch
          %541 = sbr.rel (%p539) target = $region94
        $region93: #{tpu_custom_call.1} parent=73 // pred_region
          %s543 = ssub.s32 128, 128
          %544 = vsyncadd %s535, %s543
          %s545 = smul.addr %s23, 128
          %s546 = scalar_lea.hbm %s5, %s545
          %s548 = sshll.u32 %s538, 4
          %s549 = int_to_ptr.vmem [resolvable:$true] %s548
          %551 = dma.vmem_to_hbm [thread:$0]  %s549, 128, %s546, %s535
        $region94: #{tpu_custom_call.1} parent=73 // pred_fallthru
          _
      $region74: #{tpu_custom_call.1} parent=5 // pred_fallthru
        _
      %p552 = scmp.le.s32.totalorder 2, %s14
      // Predicated region
      $region95: #{tpu_custom_call.1} parent=5 // pred_check
        %p553 = pneg %p552
      $region96: #{tpu_custom_call.1} parent=5 // pred_check_branch
        %555 = sbr.rel (%p553) target = $region98
      $region97: #{tpu_custom_call.1} parent=5 // pred_region
        %s556 = ssub.s32 %s14, 2
        // Predicated region
        $region99: #{tpu_custom_call.1} parent=97 // pred_check
          %p557 = pneg %p180
        $region100: #{tpu_custom_call.1} parent=97 // pred_check_branch
          %559 = sbr.rel (%p557) target = $region102
        $region101: #{tpu_custom_call.1} parent=97 // pred_region
          %s560 = sand.u32 %s165, 1
          %s561 = scalar_lea.sflag [#allocation4], %s560
          %s562 = sand.u32 %s165, 1
          %s563 = smul.addr %s562, 8
          %s564 = scalar_lea.vmem [#allocation3], %s563
          %565 = dma.done %s561, 128
        $region102: #{tpu_custom_call.1} parent=97 // pred_fallthru
          _
      $region98: #{tpu_custom_call.1} parent=5 // pred_fallthru
        _
    $region6: #{tpu_custom_call.1} parent=1 // loop_footer
      %s18 = sadd.s32 1, %s14
    $region7: #{tpu_custom_call.1} parent=1 // loop_footer_branch
      %13 = sbr.rel target = $region3
    $region8: #{tpu_custom_call.1} parent=1 // loop_exit
      _
    %566 = vsyncpa [#allocation4], 1
    %s567 = scalar_lea.sflag [#allocation4], 1
    %568 = vsyncpa %s567, 1

</llo_original>
